<compile_context>
chip_gen: v6e
topology: v6e:2x2x1
jax: 0.10.0
libtpu: 0.0.40
codegen_flags: <defaults>
</compile_context>

<pallas_src>
import functools

import jax
import jax.numpy as jnp
from jax.experimental import pallas as pl
from jax.experimental.pallas import tpu as pltpu


def _round_up(x, m):
    return (x + m - 1) // m * m


def velodrome_kernel(x_ref, w_enc_ref, b_enc_ref, w_head_ref, b_head_ref, out_ref):
    """One batch tile of the fused Velodrome forward pass (eval mode).

    x_ref      : (TILE_N, F_pad) bf16  input features (zero-padded along F)
    w_enc_ref  : (F_pad, H)      bf16  encoder weight with BatchNorm scale folded in
    b_enc_ref  : (1, H)          f32   encoder bias with BatchNorm shift folded in
    w_head_ref : (8, H)          f32   row 0 = softmax-mixed head weights, rows 1..7 zero
    b_head_ref : (1, 1)          f32   softmax-mixed head bias
    out_ref    : (1, TILE_N)     f32   lane-dense blended prediction row for this tile
    """
    # Encoder Linear (+ folded BatchNorm) on the MXU, f32 accumulate.
    z = jnp.dot(x_ref[...], w_enc_ref[...], preferred_element_type=jnp.float32)
    # ReLU; Dropout is identity at inference time.
    h = jnp.maximum(z + b_enc_ref[...], jnp.float32(0.0))
    # Folded (pred1, pred2, softmax-mix) head. Contract over H with a transposed rhs
    # ("md,nd->mn") so the result is already lane-dense: (8, H) x (TILE_N, H) -> (8, TILE_N).
    p = jax.lax.dot_general(
        w_head_ref[...], h,
        dimension_numbers=(((1,), (1,)), ((), ())),
        preferred_element_type=jnp.float32)
    out_ref[...] = p[0:1, :] + b_head_ref[...]


@functools.partial(jax.jit, static_argnames=("max_tile_n",))
def velodrome_forward(x, params, w1_hist, w2_hist, *, max_tile_n=512):
    """Returns (N, 1) float32 predictions matching the PyTorch eval-mode forward."""
    x = jnp.asarray(x, jnp.float32)
    n, f = x.shape
    hid = params["w_enc"].shape[1]

    # ---------------- host-side exact folds (f32) ----------------
    inv_std = jax.lax.rsqrt(params["var"] + jnp.float32(1e-5))   # PyTorch BN eps default
    scale = params["gamma"] * inv_std                            # (1, H)
    w_enc = params["w_enc"] * scale                              # (F, H)
    b_enc = (params["b_enc"] - params["mean"]) * scale + params["beta"]  # (1, H)

    w_stack = jnp.stack([jnp.mean(w1_hist), jnp.mean(w2_hist)])
    w_mix = jax.nn.softmax(w_stack).astype(jnp.float32)          # (2,)
    w_eff = (params["w_head"] @ w_mix[:, None]).T                # (1, H)
    b_eff = params["b_head"] @ w_mix[:, None]                    # (1, 1)
    # Pad the head weight to 8 sublanes so the head matmul has an aligned M dimension.
    w_head_pad = jnp.zeros((8, hid), jnp.float32).at[0:1, :].set(w_eff)

    # ---------------- layout: pad F to lane width, N to the batch tile ----------------
    f_pad = _round_up(f, 128)
    n_pad = max(_round_up(n, 128), 128)
    tile_n = 128
    for cand in (512, 256):
        if cand <= max_tile_n and n_pad % cand == 0:
            tile_n = cand
            break

    x_p = jnp.zeros((n_pad, f_pad), jnp.float32).at[:n, :f].set(x).astype(jnp.bfloat16)
    w_enc_p = jnp.zeros((f_pad, hid), jnp.float32).at[:f, :].set(w_enc).astype(jnp.bfloat16)

    grid = (n_pad // tile_n,)

    cost = pl.CostEstimate(
        flops=2 * n_pad * f_pad * hid + 2 * 8 * n_pad * hid,
        transcendentals=0,
        bytes_accessed=(x_p.size * 2 + w_enc_p.size * 2 + b_enc.size * 4
                        + w_head_pad.size * 4 + b_eff.size * 4 + n_pad * 4),
    )

    out_row = pl.pallas_call(
        velodrome_kernel,
        out_shape=jax.ShapeDtypeStruct((1, n_pad), jnp.float32),
        grid_spec=pltpu.PrefetchScalarGridSpec(
            num_scalar_prefetch=0,
            grid=grid,
            in_specs=[
                pl.BlockSpec((tile_n, f_pad), lambda i: (i, 0)),   # X tile (pipelined)
                pl.BlockSpec((f_pad, hid), lambda i: (0, 0)),      # encoder weight (resident)
                pl.BlockSpec((1, hid), lambda i: (0, 0)),          # encoder bias (resident)
                pl.BlockSpec((8, hid), lambda i: (0, 0)),          # folded head weight (resident)
                pl.BlockSpec((1, 1), lambda i: (0, 0)),            # folded head bias (resident)
            ],
            out_specs=pl.BlockSpec((1, tile_n), lambda i: (0, i)),
        ),
        compiler_params=pltpu.CompilerParams(
            dimension_semantics=("parallel",),
            vmem_limit_bytes=32 * 1024 * 1024,
        ),
        cost_estimate=cost,
    )(x_p, w_enc_p, b_enc, w_head_pad, b_eff)

    return out_row[0, :n].reshape(n, 1)


def velodrome_reference(x, params, w1_hist, w2_hist):
    """Plain-JAX reference of the eval-mode forward (for a correctness check)."""
    x = jnp.asarray(x, jnp.float32)
    z = x @ params["w_enc"] + params["b_enc"]
    inv_std = jax.lax.rsqrt(params["var"] + jnp.float32(1e-5))
    h = (z - params["mean"]) * inv_std * params["gamma"] + params["beta"]
    h = jnp.maximum(h, 0.0)
    p = h @ params["w_head"] + params["b_head"]                  # (N, 2)
    w_mix = jax.nn.softmax(jnp.stack([jnp.mean(w1_hist), jnp.mean(w2_hist)]))
    return (p @ w_mix[:, None]).astype(jnp.float32)              # (N, 1)


def init_params(key, num_features, hidden):
    """Deterministic synthetic parameters (PyTorch-style uniform fan-in init)."""
    k = jax.random.split(key, 6)
    bound_enc = 1.0 / jnp.sqrt(num_features)
    bound_head = 1.0 / jnp.sqrt(hidden)
    return {
        "w_enc": jax.random.uniform(k[0], (num_features, hidden), jnp.float32,
                                    -bound_enc, bound_enc),
        "b_enc": jax.random.uniform(k[1], (1, hidden), jnp.float32,
                                    -bound_enc, bound_enc),
        # BatchNorm1d eval-mode params / running stats
        "gamma": jnp.ones((1, hidden), jnp.float32),
        "beta": jnp.zeros((1, hidden), jnp.float32),
        "mean": 0.05 * jax.random.normal(k[2], (1, hidden), jnp.float32),
        "var": jnp.ones((1, hidden), jnp.float32)
               + 0.1 * jax.random.uniform(k[3], (1, hidden), jnp.float32),
        # pred1 / pred2 Linear(H, 1) stacked as columns of (H, 2)
        "w_head": jax.random.uniform(k[4], (hidden, 2), jnp.float32,
                                     -bound_head, bound_head),
        "b_head": jax.random.uniform(k[5], (1, 2), jnp.float32,
                                     -bound_head, bound_head),
    }


if __name__ == "__main__":
    key = jax.random.PRNGKey(0)
    k_x, k_p, k_w1, k_w2 = jax.random.split(key, 4)

    N, F, H = 16, 64, 128  # small batch, feature dim, hidden dim

    x = jax.random.normal(k_x, (N, F), jnp.float32)
    params = init_params(k_p, F, H)

    # Histories of per-epoch losses used to form the ensemble softmax weights.
    epochs = 8
    w1_hist = 0.5 + 0.1 * jax.random.uniform(k_w1, (epochs,), jnp.float32)
    w2_hist = 0.5 + 0.1 * jax.random.uniform(k_w2, (epochs,), jnp.float32)

    out = velodrome_forward(x, params, w1_hist, w2_hist)
    jax.block_until_ready(out)

    assert out.shape == (N, 1) and out.dtype == jnp.float32

    # Correctness vs. plain-JAX reference (loose tolerance: bf16 encoder matmul).
    ref = velodrome_reference(x, params, w1_hist, w2_hist)
    assert jnp.allclose(out, ref, atol=3e-2, rtol=3e-2), "kernel diverges from reference"

    print("KERNEL_OK")
</pallas_src>

<mosaic_0001>
module attributes {stable_mosaic.version = 11 : i64} {
  func.func @velodrome_kernel(%arg0: i32, %arg1: memref<128x128xbf16, #tpu.memory_space<vmem>>, %arg2: memref<128x128xbf16, #tpu.memory_space<vmem>>, %arg3: memref<1x128xf32, #tpu.memory_space<vmem>>, %arg4: memref<8x128xf32, #tpu.memory_space<vmem>>, %arg5: memref<1x1xf32, #tpu.memory_space<vmem>>, %arg6: memref<1x128xf32, #tpu.memory_space<vmem>>) attributes {dimension_semantics = [#tpu.dimension_semantics<parallel>], iteration_bounds = array<i64: 1>, scalar_prefetch = 0 : i64, scratch_operands = 0 : i64, tpu.core_type = #tpu.core_type<tc>, window_params = [{transform_indices = @transform_0, window_bounds = array<i64: 128, 128>}, {pipeline_mode = #tpu.pipeline_mode<synchronous>, transform_indices = @transform_1, window_bounds = array<i64: 128, 128>}, {pipeline_mode = #tpu.pipeline_mode<synchronous>, transform_indices = @transform_2, window_bounds = array<i64: 1, 128>}, {pipeline_mode = #tpu.pipeline_mode<synchronous>, transform_indices = @transform_3, window_bounds = array<i64: 8, 128>}, {pipeline_mode = #tpu.pipeline_mode<synchronous>, transform_indices = @transform_4, window_bounds = array<i64: 1, 1>}, {transform_indices = @transform_5, window_bounds = array<i64: 1, 128>}]} {
    %c0 = arith.constant 0 : index
    %c0_0 = arith.constant 0 : index
    %0 = vector.load %arg1[%c0, %c0_0] : memref<128x128xbf16, #tpu.memory_space<vmem>>, vector<128x128xbf16>
    %c0_1 = arith.constant 0 : index
    %c0_2 = arith.constant 0 : index
    %1 = vector.load %arg2[%c0_1, %c0_2] : memref<128x128xbf16, #tpu.memory_space<vmem>>, vector<128x128xbf16>
    %cst = arith.constant dense<0.000000e+00> : vector<128x128xf32>
    %2 = tpu.matmul %0, %1, %cst {dimension_numbers = #tpu.dot_dimension_numbers<[1], [0], [0], [1], [0, 0, 1, 1], [], []>} : vector<128x128xbf16>, vector<128x128xbf16>, vector<128x128xf32> -> vector<128x128xf32>
    %c0_3 = arith.constant 0 : index
    %c0_4 = arith.constant 0 : index
    %3 = vector.load %arg3[%c0_3, %c0_4] : memref<1x128xf32, #tpu.memory_space<vmem>>, vector<1x128xf32>
    %4 = vector.broadcast %3 : vector<1x128xf32> to vector<128x128xf32>
    %5 = arith.addf %2, %4 : vector<128x128xf32>
    %cst_5 = arith.constant 0.000000e+00 : f32
    %6 = vector.broadcast %cst_5 : f32 to vector<128x128xf32>
    %7 = arith.maximumf %5, %6 : vector<128x128xf32>
    %c0_6 = arith.constant 0 : index
    %c0_7 = arith.constant 0 : index
    %8 = vector.load %arg4[%c0_6, %c0_7] : memref<8x128xf32, #tpu.memory_space<vmem>>, vector<8x128xf32>
    %cst_8 = arith.constant dense<0.000000e+00> : vector<8x128xf32>
    %9 = tpu.matmul %8, %7, %cst_8 {dimension_numbers = #tpu.dot_dimension_numbers<[1], [1], [0], [0], [0, 0, 1, 0], [], []>} : vector<8x128xf32>, vector<128x128xf32>, vector<8x128xf32> -> vector<8x128xf32>
    %10 = vector.extract_strided_slice %9 {offsets = [0, 0], sizes = [1, 128], strides = [1, 1]} : vector<8x128xf32> to vector<1x128xf32>
    %c0_9 = arith.constant 0 : index
    %c0_10 = arith.constant 0 : index
    %11 = vector.load %arg5[%c0_9, %c0_10] : memref<1x1xf32, #tpu.memory_space<vmem>>, vector<1x1xf32>
    %12 = vector.broadcast %11 : vector<1x1xf32> to vector<1x128xf32>
    %13 = arith.addf %10, %12 : vector<1x128xf32>
    %c0_11 = arith.constant 0 : index
    %c0_12 = arith.constant 0 : index
    %14 = vector.load %arg6[%c0_11, %c0_12] : memref<1x128xf32, #tpu.memory_space<vmem>>, vector<1x128xf32>
    tpu.vector_store %arg6[%c0_11, %c0_12], %13 {strides = array<i32>} : memref<1x128xf32, #tpu.memory_space<vmem>>, vector<1x128xf32>,
    return
  }
  func.func @transform_0(%arg0: i32) -> (i32, i32) {
    %c0_i32 = arith.constant 0 : i32
    %c0_i32_0 = arith.constant 0 : i32
    return %arg0, %c0_i32 : i32, i32
  }
  func.func @transform_1(%arg0: i32) -> (i32, i32) {
    %c0_i32 = arith.constant 0 : i32
    %c0_i32_0 = arith.constant 0 : i32
    %c0_i32_1 = arith.constant 0 : i32
    return %c0_i32, %c0_i32_0 : i32, i32
  }
  func.func @transform_2(%arg0: i32) -> (i32, i32) {
    %c0_i32 = arith.constant 0 : i32
    %c0_i32_0 = arith.constant 0 : i32
    %c0_i32_1 = arith.constant 0 : i32
    return %c0_i32, %c0_i32_0 : i32, i32
  }
  func.func @transform_3(%arg0: i32) -> (i32, i32) {
    %c0_i32 = arith.constant 0 : i32
    %c0_i32_0 = arith.constant 0 : i32
    %c0_i32_1 = arith.constant 0 : i32
    return %c0_i32, %c0_i32_0 : i32, i32
  }
  func.func @transform_4(%arg0: i32) -> (i32, i32) {
    %c0_i32 = arith.constant 0 : i32
    %c0_i32_0 = arith.constant 0 : i32
    %c0_i32_1 = arith.constant 0 : i32
    return %c0_i32, %c0_i32_0 : i32, i32
  }
  func.func @transform_5(%arg0: i32) -> (i32, i32) {
    %c0_i32 = arith.constant 0 : i32
    %c0_i32_0 = arith.constant 0 : i32
    return %c0_i32, %arg0 : i32, i32
  }
}

</mosaic_0001>

<llo_original>
// kernel: velodrome_forward.1
$region0: #{velodrome_forward.1}
  #allocation0 [shape = 'u32[]', space=smem, size = 0x4, offset = 0x4, fixed_abs, tag = 'smem constant byte address 0x4 - core index']
  #allocation1 [shape = 'u32[144,128]{1,0:T(1,128)}', space=vmem, size = 0x12000, scoped, tag = 'internal scratch']
  #allocation2 [shape = 'f32[1,1]{1,0:T(1,128)S(1)}', space=vmem, size = 0x200, scoped, tag = 'scoped memory for velodrome_forward.1']
  %s0 = inlined_call_operand.vmem [shape: bf16[128,128], index: 0, kind: input, shape index: {}]
  %s1 = inlined_call_operand.vmem [shape: bf16[128,128], index: 1, kind: input, shape index: {}]
  %s2 = inlined_call_operand.vmem [shape: f32[1,128], index: 2, kind: input, shape index: {}]
  %s3 = inlined_call_operand.vmem [shape: f32[8,128], index: 3, kind: input, shape index: {}]
  %s4 = inlined_call_operand.<no memory space> [shape: f32[1,1], index: 4, kind: input, shape index: {}]
  %s5 = inlined_call_operand.vmem [shape: f32[1,128], index: 5, kind: output, shape index: {}]
  %s6 = sld [smem:[#allocation0]]
  $region30: #{velodrome_forward.1} parent=0
    _
  %s8 = ssub.s32 1, %s6
  %s9 = scalar_select 0, %s8, %s6
  %v10 = vstv %s4
  %11 = vst [vmem:[#allocation2] sm:$0x1] %v10
  // Predicated region
  $region2: #{velodrome_forward.1} parent=0 // pred_check
    _
  $region3: #{velodrome_forward.1} parent=0 // pred_check_branch
    %13 = sbr.rel (0) target = $region5
  $region4: #{velodrome_forward.1} parent=0 // pred_region
    _
  $region5: #{velodrome_forward.1} parent=0 // pred_fallthru
    _
  // Predicated region
  $region6: #{velodrome_forward.1} parent=0 // pred_check
    _
  $region7: #{velodrome_forward.1} parent=0 // pred_check_branch
    %15 = sbr.rel (0) target = $region9
  $region8: #{velodrome_forward.1} parent=0 // pred_region
    _
  $region9: #{velodrome_forward.1} parent=0 // pred_fallthru
    _
  // Predicated region
  $region10: #{velodrome_forward.1} parent=0 // pred_check
    _
  $region11: #{velodrome_forward.1} parent=0 // pred_check_branch
    %17 = sbr.rel (0) target = $region13
  $region12: #{velodrome_forward.1} parent=0 // pred_region
    _
  $region13: #{velodrome_forward.1} parent=0 // pred_fallthru
    _
  // Predicated region
  $region14: #{velodrome_forward.1} parent=0 // pred_check
    _
  $region15: #{velodrome_forward.1} parent=0 // pred_check_branch
    %19 = sbr.rel (0) target = $region17
  $region16: #{velodrome_forward.1} parent=0 // pred_region
    _
  $region17: #{velodrome_forward.1} parent=0 // pred_fallthru
    _
  // Predicated region
  $region18: #{velodrome_forward.1} parent=0 // pred_check
    _
  $region19: #{velodrome_forward.1} parent=0 // pred_check_branch
    %21 = sbr.rel (0) target = $region21
  $region20: #{velodrome_forward.1} parent=0 // pred_region
    _
  $region21: #{velodrome_forward.1} parent=0 // pred_fallthru
    _
  %v23 = vld [vmem:[%s0] sm:$0xf]
  %v24 = vld [vmem:[%s0 + $0x4] sm:$0xf]
  %v25 = vld [vmem:[%s0 + $0x8] sm:$0xf]
  %v26 = vld [vmem:[%s0 + $0xc] sm:$0xf]
  %v27 = vld [vmem:[%s0 + $0x10] sm:$0xf]
  %v28 = vld [vmem:[%s0 + $0x14] sm:$0xf]
  %v29 = vld [vmem:[%s0 + $0x18] sm:$0xf]
  %v30 = vld [vmem:[%s0 + $0x1c] sm:$0xf]
  %v31 = vld [vmem:[%s0 + $0x20] sm:$0xf]
  %v32 = vld [vmem:[%s0 + $0x24] sm:$0xf]
  %v33 = vld [vmem:[%s0 + $0x28] sm:$0xf]
  %v34 = vld [vmem:[%s0 + $0x2c] sm:$0xf]
  %v35 = vld [vmem:[%s0 + $0x30] sm:$0xf]
  %v36 = vld [vmem:[%s0 + $0x34] sm:$0xf]
  %v37 = vld [vmem:[%s0 + $0x38] sm:$0xf]
  %v38 = vld [vmem:[%s0 + $0x3c] sm:$0xf]
  %v39 = vld [vmem:[%s1] sm:$0xf]
  %v40 = vld [vmem:[%s1 + $0x4] sm:$0xf]
  %v41 = vld [vmem:[%s1 + $0x8] sm:$0xf]
  %v42 = vld [vmem:[%s1 + $0xc] sm:$0xf]
  %v43 = vld [vmem:[%s1 + $0x10] sm:$0xf]
  %v44 = vld [vmem:[%s1 + $0x14] sm:$0xf]
  %v45 = vld [vmem:[%s1 + $0x18] sm:$0xf]
  %v46 = vld [vmem:[%s1 + $0x1c] sm:$0xf]
  %v47 = vld [vmem:[%s1 + $0x20] sm:$0xf]
  %v48 = vld [vmem:[%s1 + $0x24] sm:$0xf]
  %v49 = vld [vmem:[%s1 + $0x28] sm:$0xf]
  %v50 = vld [vmem:[%s1 + $0x2c] sm:$0xf]
  %v51 = vld [vmem:[%s1 + $0x30] sm:$0xf]
  %v52 = vld [vmem:[%s1 + $0x34] sm:$0xf]
  %v53 = vld [vmem:[%s1 + $0x38] sm:$0xf]
  %v54 = vld [vmem:[%s1 + $0x3c] sm:$0xf]
  %v55 = vld [vmem:[%s2] sm:$0x1]
  %v57 = vlaneseq
  %v58 = vshrl.u32 %v57, 7
  %v59 = vsub.s32 0, %v58
  %v60 = vrot.slane %v55, %v59
  %v78 = vunpack.c.l.b16 %v23
  %v79 = vunpack.c.l.b16 %v24
  %v80 = vunpack.c.l.b16 %v25
  %v81 = vunpack.c.l.b16 %v26
  %v82 = vunpack.c.l.b16 %v27
  %v83 = vunpack.c.l.b16 %v28
  %v84 = vunpack.c.l.b16 %v29
  %v85 = vunpack.c.l.b16 %v30
  %v86 = vunpack.c.l.b16 %v31
  %v87 = vunpack.c.l.b16 %v32
  %v88 = vunpack.c.l.b16 %v33
  %v89 = vunpack.c.l.b16 %v34
  %v90 = vunpack.c.l.b16 %v35
  %v91 = vunpack.c.l.b16 %v36
  %v92 = vunpack.c.l.b16 %v37
  %v93 = vunpack.c.l.b16 %v38
  %v94 = vpack.c.b16 %v79, %v78
  %v95 = vpack.c.b16 %v81, %v80
  %v96 = vpack.c.b16 %v83, %v82
  %v97 = vpack.c.b16 %v85, %v84
  %v98 = vpack.c.b16 %v87, %v86
  %v99 = vpack.c.b16 %v89, %v88
  %v100 = vpack.c.b16 %v91, %v90
  %v101 = vpack.c.b16 %v93, %v92
  %v126 = vunpack.c.l.b16 %v39
  %v127 = vunpack.c.l.b16 %v40
  %v128 = vunpack.c.l.b16 %v41
  %v129 = vunpack.c.l.b16 %v42
  %v130 = vunpack.c.l.b16 %v43
  %v131 = vunpack.c.l.b16 %v44
  %v132 = vunpack.c.l.b16 %v45
  %v133 = vunpack.c.l.b16 %v46
  %v134 = vunpack.c.l.b16 %v47
  %v135 = vunpack.c.l.b16 %v48
  %v136 = vunpack.c.l.b16 %v49
  %v137 = vunpack.c.l.b16 %v50
  %v138 = vunpack.c.l.b16 %v51
  %v139 = vunpack.c.l.b16 %v52
  %v140 = vunpack.c.l.b16 %v53
  %v141 = vunpack.c.l.b16 %v54
  %v142 = vpack.c.b16 %v127, %v126
  %v143 = vpack.c.b16 %v129, %v128
  %v144 = vpack.c.b16 %v131, %v130
  %v145 = vpack.c.b16 %v133, %v132
  %v146 = vpack.c.b16 %v135, %v134
  %v147 = vpack.c.b16 %v137, %v136
  %v148 = vpack.c.b16 %v139, %v138
  %v149 = vpack.c.b16 %v141, %v140
  %158 = vmatprep.subr.bf16.mxu0 0
  %159 = vmatpush1.bf16.msra.mxu0 %v149
  %160 = vmatprep.subr.bf16.mxu0 0
  %161 = vmatpush1.bf16.msra.mxu0 %v148
  %162 = vmatprep.subr.bf16.mxu0 0
  %163 = vmatpush1.bf16.msra.mxu0 %v147
  %164 = vmatprep.subr.bf16.mxu0 0
  %165 = vmatpush1.bf16.msra.mxu0 %v146
  %166 = vmatprep.subr.bf16.mxu0 0
  %167 = vmatpush1.bf16.msra.mxu0 %v145
  %168 = vmatprep.subr.bf16.mxu0 0
  %169 = vmatpush1.bf16.msra.mxu0 %v144
  %170 = vmatprep.subr.bf16.mxu0 0
  %171 = vmatpush1.bf16.msra.mxu0 %v143
  %172 = vmatprep.subr.bf16.mxu0 0
  %173 = vmatpush1.bf16.msra.mxu0 %v142
  %174 = vmatprep.subr.bf16.mxu0 0
  %175 = vmatpush2.bf16.msra.mxu0 0
  %176 = vmatprep.subr.bf16.mxu0 0
  %177 = vmatpush2.bf16.msra.mxu0 0
  %178 = vmatprep.subr.bf16.mxu0 0
  %179 = vmatpush2.bf16.msra.mxu0 0
  %180 = vmatprep.subr.bf16.mxu0 0
  %181 = vmatpush2.bf16.msra.mxu0 0
  %182 = vmatprep.subr.bf16.mxu0 0
  %183 = vmatpush2.bf16.msra.mxu0 0
  %184 = vmatprep.subr.bf16.mxu0 0
  %185 = vmatpush2.bf16.msra.mxu0 0
  %186 = vmatprep.subr.bf16.mxu0 0
  %187 = vmatpush2.bf16.msra.mxu0 0
  %188 = vmatprep.subr.bf16.mxu0 0
  %189 = vmatpush2.bf16.msra.mxu0 0
  %190 = vmatprep.mubr.bf16.mxu0 0
  %191 = vmatmul.mubr.bf16.gmra.mxu0 %v94
  %v192 = vpop.f32.mrf.mxu0
  %v193 = vadd.f32 %v60, %v192
  %v194 = vpop.f32.mrf.mxu0
  %v195 = vpop.f32.mrf.mxu0
  %v196 = vadd.f32 %v60, %v195
  %v197 = vpop.f32.mrf.mxu0
  %198 = vmatprep.mubr.bf16.mxu0 0
  %199 = vmatmul.mubr.bf16.gmra.mxu0 %v95
  %v200 = vpop.f32.mrf.mxu0
  %v201 = vadd.f32 %v60, %v200
  %v202 = vpop.f32.mrf.mxu0
  %v203 = vpop.f32.mrf.mxu0
  %v204 = vadd.f32 %v60, %v203
  %v205 = vpop.f32.mrf.mxu0
  %206 = vmatprep.mubr.bf16.mxu0 0
  %207 = vmatmul.mubr.bf16.gmra.mxu0 %v96
  %v208 = vpop.f32.mrf.mxu0
  %v209 = vadd.f32 %v60, %v208
  %v210 = vpop.f32.mrf.mxu0
  %v211 = vpop.f32.mrf.mxu0
  %v212 = vadd.f32 %v60, %v211
  %v213 = vpop.f32.mrf.mxu0
  %214 = vmatprep.mubr.bf16.mxu0 0
  %215 = vmatmul.mubr.bf16.gmra.mxu0 %v97
  %v216 = vpop.f32.mrf.mxu0
  %v217 = vadd.f32 %v60, %v216
  %v218 = vpop.f32.mrf.mxu0
  %v219 = vpop.f32.mrf.mxu0
  %v220 = vadd.f32 %v60, %v219
  %v221 = vpop.f32.mrf.mxu0
  %222 = vmatprep.mubr.bf16.mxu0 0
  %223 = vmatmul.mubr.bf16.gmra.mxu0 %v98
  %v224 = vpop.f32.mrf.mxu0
  %v225 = vadd.f32 %v60, %v224
  %v226 = vpop.f32.mrf.mxu0
  %v227 = vpop.f32.mrf.mxu0
  %v228 = vadd.f32 %v60, %v227
  %v229 = vpop.f32.mrf.mxu0
  %230 = vmatprep.mubr.bf16.mxu0 0
  %231 = vmatmul.mubr.bf16.gmra.mxu0 %v99
  %v232 = vpop.f32.mrf.mxu0
  %v233 = vadd.f32 %v60, %v232
  %v234 = vpop.f32.mrf.mxu0
  %v235 = vpop.f32.mrf.mxu0
  %v236 = vadd.f32 %v60, %v235
  %v237 = vpop.f32.mrf.mxu0
  %238 = vmatprep.mubr.bf16.mxu0 0
  %239 = vmatmul.mubr.bf16.gmra.mxu0 %v100
  %v240 = vpop.f32.mrf.mxu0
  %v241 = vadd.f32 %v60, %v240
  %v242 = vpop.f32.mrf.mxu0
  %v243 = vpop.f32.mrf.mxu0
  %v244 = vadd.f32 %v60, %v243
  %v245 = vpop.f32.mrf.mxu0
  %246 = vmatprep.mubr.bf16.mxu0 0
  %247 = vmatmul.mubr.bf16.gmra.mxu0 %v101
  %v248 = vpop.f32.mrf.mxu0
  %v249 = vadd.f32 %v60, %v248
  %v250 = vpop.f32.mrf.mxu0
  %v251 = vpop.f32.mrf.mxu0
  %v252 = vadd.f32 %v60, %v251
  %v253 = vpop.f32.mrf.mxu0
  %254 = vdwg.mxu0
  %v255 = vmax.f32 %v193, 0.0
  %v256 = vmax.f32 %v196, 0.0
  %v257 = vmax.f32 %v201, 0.0
  %v258 = vmax.f32 %v204, 0.0
  %v259 = vmax.f32 %v209, 0.0
  %v260 = vmax.f32 %v212, 0.0
  %v261 = vmax.f32 %v217, 0.0
  %v262 = vmax.f32 %v220, 0.0
  %v263 = vmax.f32 %v225, 0.0
  %v264 = vmax.f32 %v228, 0.0
  %v265 = vmax.f32 %v233, 0.0
  %v266 = vmax.f32 %v236, 0.0
  %v267 = vmax.f32 %v241, 0.0
  %v268 = vmax.f32 %v244, 0.0
  %v269 = vmax.f32 %v249, 0.0
  %v270 = vmax.f32 %v252, 0.0
  %v271 = vld [vmem:[%s3] sm:$0xff]
  %272 = vmatprep.subr.mxu0 0.0
  %273 = vmatpush1.xpose.msra.mxu0 %v270
  %274 = vmatprep.subr.mxu0 0.0
  %275 = vmatpush1.xpose.msra.mxu0 %v269
  %276 = vmatprep.subr.mxu0 0.0
  %277 = vmatpush1.xpose.msra.mxu0 %v268
  %278 = vmatprep.subr.mxu0 0.0
  %279 = vmatpush1.xpose.msra.mxu0 %v267
  %280 = vmatprep.subr.mxu0 0.0
  %281 = vmatpush1.xpose.msra.mxu0 %v266
  %282 = vmatprep.subr.mxu0 0.0
  %283 = vmatpush1.xpose.msra.mxu0 %v265
  %284 = vmatprep.subr.mxu0 0.0
  %285 = vmatpush1.xpose.msra.mxu0 %v264
  %286 = vmatprep.subr.mxu0 0.0
  %287 = vmatpush1.xpose.msra.mxu0 %v263
  %288 = vmatprep.subr.mxu0 0.0
  %289 = vmatpush1.xpose.msra.mxu0 %v262
  %290 = vmatprep.subr.mxu0 0.0
  %291 = vmatpush1.xpose.msra.mxu0 %v261
  %292 = vmatprep.subr.mxu0 0.0
  %293 = vmatpush1.xpose.msra.mxu0 %v260
  %294 = vmatprep.subr.mxu0 0.0
  %295 = vmatpush1.xpose.msra.mxu0 %v259
  %296 = vmatprep.subr.mxu0 0.0
  %297 = vmatpush1.xpose.msra.mxu0 %v258
  %298 = vmatprep.subr.mxu0 0.0
  %299 = vmatpush1.xpose.msra.mxu0 %v257
  %300 = vmatprep.subr.mxu0 0.0
  %301 = vmatpush1.xpose.msra.mxu0 %v256
  %302 = vmatprep.subr.mxu0 0.0
  %303 = vmatpush1.xpose.msra.mxu0 %v255
  %304 = vmatprep.subr.mxu0 0.0
  %305 = vmatpush2.xpose.msra.mxu0 0.0
  %306 = vmatprep.subr.mxu0 0.0
  %307 = vmatpush2.xpose.msra.mxu0 0.0
  %308 = vmatprep.subr.mxu0 0.0
  %309 = vmatpush2.xpose.msra.mxu0 0.0
  %310 = vmatprep.subr.mxu0 0.0
  %311 = vmatpush2.xpose.msra.mxu0 0.0
  %312 = vmatprep.subr.mxu0 0.0
  %313 = vmatpush2.xpose.msra.mxu0 0.0
  %314 = vmatprep.subr.mxu0 0.0
  %315 = vmatpush2.xpose.msra.mxu0 0.0
  %316 = vmatprep.subr.mxu0 0.0
  %317 = vmatpush2.xpose.msra.mxu0 0.0
  %318 = vmatprep.subr.mxu0 0.0
  %319 = vmatpush2.xpose.msra.mxu0 0.0
  %320 = vmatprep.subr.mxu0 0.0
  %321 = vmatpush2.xpose.msra.mxu0 0.0
  %322 = vmatprep.subr.mxu0 0.0
  %323 = vmatpush2.xpose.msra.mxu0 0.0
  %324 = vmatprep.subr.mxu0 0.0
  %325 = vmatpush2.xpose.msra.mxu0 0.0
  %326 = vmatprep.subr.mxu0 0.0
  %327 = vmatpush2.xpose.msra.mxu0 0.0
  %328 = vmatprep.subr.mxu0 0.0
  %329 = vmatpush2.xpose.msra.mxu0 0.0
  %330 = vmatprep.subr.mxu0 0.0
  %331 = vmatpush2.xpose.msra.mxu0 0.0
  %332 = vmatprep.subr.mxu0 0.0
  %333 = vmatpush2.xpose.msra.mxu0 0.0
  %334 = vmatprep.subr.mxu0 0.0
  %335 = vmatpush2.xpose.msra.mxu0 0.0
  %336 = vmatprep.mubr.f32.mxu0 0.0
  %337 = vmatmul.mubr.f32.gmra.mxu0 %v271
  %v338 = vpop.f32.mrf.mxu0
  %v339 = vadd.f32 0.0, %v338
  %v340 = vpop.f32.mrf.mxu0
  %341 = vdwg.mxu0
  %v342 = vld [vmem:[#allocation2] sm:$0x1]
  %344 = vset.pattern.permute.xlu0 0
  %345 = vperm.xlu0 %344, %v342
  %v346 = vpop.permute.xlu0 %345
  %v348 = vlaneseq
  %v349 = vshrl.u32 %v348, 7
  %v350 = vsub.s32 0, %v349
  %v351 = vrot.slane %v346, %v350
  %v352 = vadd.f32 %v339, %v351
  %353 = vst [vmem:[%s5] sm:$0x1] %v352
  // Predicated region
  $region22: #{velodrome_forward.1} parent=0 // pred_check
    _
  $region23: #{velodrome_forward.1} parent=0 // pred_check_branch
    %355 = sbr.rel (0) target = $region25
  $region24: #{velodrome_forward.1} parent=0 // pred_region
    _
  $region25: #{velodrome_forward.1} parent=0 // pred_fallthru
    _
  // Predicated region
  $region26: #{velodrome_forward.1} parent=0 // pred_check
    _
  $region27: #{velodrome_forward.1} parent=0 // pred_check_branch
    %357 = sbr.rel (0) target = $region29
  $region28: #{velodrome_forward.1} parent=0 // pred_region
    _
  $region29: #{velodrome_forward.1} parent=0 // pred_fallthru
    _

</llo_original>
